<compile_context>
chip_gen: v7x
topology: tpu7x:2x2x1
jax: 0.10.0
libtpu: 0.0.40
codegen_flags: <defaults>
</compile_context>

<pallas_src>
import functools
import math

import jax
import jax.numpy as jnp
from jax.experimental import pallas as pl
from jax.experimental.pallas import tpu as pltpu


def make_pe_table(d_model: int, max_len: int = 5000) -> jnp.ndarray:
    """Same values as the PyTorch __init__ buffer, stored as (max_len, d_model)."""
    assert d_model % 2 == 0, "PositionalEncoding requires an even d_model"
    position = jnp.arange(0, max_len, dtype=jnp.float32)[:, None]            # (L, 1)
    div_term = jnp.exp(
        jnp.arange(0, d_model, 2, dtype=jnp.float32) * (-math.log(10000.0) / d_model)
    )                                                                         # (D/2,)
    pe = jnp.zeros((max_len, d_model), dtype=jnp.float32)
    pe = pe.at[:, 0::2].set(jnp.sin(position * div_term))
    pe = pe.at[:, 1::2].set(jnp.cos(position * div_term))
    return pe                                                                 # (L, D)


def _pe_add_3d_kernel(scale_ref, x_ref, pe_ref, o_ref):
    # x_ref/o_ref: (ts, B, D) VMEM; pe_ref: (ts, D) VMEM; scale_ref: SMEM (1,)
    scale = scale_ref[0]
    pe = pe_ref[...].astype(jnp.float32)[:, None, :]          # broadcast over batch
    res = x_ref[...].astype(jnp.float32) + scale * pe
    o_ref[...] = res.astype(o_ref.dtype)


def _pe_add_2d_kernel(scale_ref, x_ref, pe_ref, o_ref, *, batch: int):
    # x_ref/o_ref: (ts, B*D) VMEM (lane-dense); pe_ref: (ts, D) VMEM
    scale = scale_ref[0]
    pe = pe_ref[...].astype(jnp.float32)
    if batch > 1:
        # Replicate pe over batch along the lane axis; x[s, b*D + d] needs pe[s, d].
        pe = jnp.concatenate([pe] * batch, axis=-1)            # (ts, B*D)
    res = x_ref[...].astype(jnp.float32) + scale * pe
    o_ref[...] = res.astype(o_ref.dtype)


def _pick_tile_s(S: int, row_bytes: int,
                 target_tile_bytes: int = 4 * 1024 * 1024) -> int:
    """Largest 8-aligned S-tile whose x/out block is ~target_tile_bytes."""
    if S <= 8:
        return S                       # block first dim == full dim -> legal
    ts = max(8, target_tile_bytes // row_bytes)
    ts = min(int(ts), S)
    ts -= ts % 8                       # keep sublane-aligned tiles
    return max(8, ts)


def positional_encoding_forward(x: jnp.ndarray,
                                pe: jnp.ndarray,
                                scale: jnp.ndarray) -> jnp.ndarray:
    """x: (S, B, D); pe: (max_len, D) or (max_len, 1, D) f32; scale: (1,) f32."""
    S, B, D = x.shape
    pe2d = pe.reshape(pe.shape[0], pe.shape[-1]) if pe.ndim == 3 else pe
    max_len = pe2d.shape[0]
    assert S <= max_len, f"sequence length {S} exceeds pe max_len {max_len}"
    assert pe2d.shape[-1] == D

    # Halve pe DMA bytes when activations are bf16 (v6e/v7x); add stays f32 in-kernel.
    if x.dtype == jnp.bfloat16 and pe2d.dtype != jnp.bfloat16:
        pe2d = pe2d.astype(jnp.bfloat16)

    row_bytes = B * D * x.dtype.itemsize
    ts = _pick_tile_s(S, row_bytes)
    grid = (pl.cdiv(S, ts),)

    # Full table passed (no pe[:S] copy) whenever the tile is 8-aligned; the only
    # other case is S < 8, where a [:S] slice (a few rows) keeps block dims legal.
    pe_arg = pe2d if ts % 8 == 0 else pe2d[:S]

    cparams = pltpu.CompilerParams(
        dimension_semantics=("parallel",),       # v7x: lets both TCs split the S loop
        vmem_limit_bytes=32 * 1024 * 1024,       # <= v7x scoped default; 2x4MiB tiles fit
    )

    if D % 128 == 0 and B >= 8:
        # Already lane-dense / sublane-full: keep the natural 3D layout.
        return pl.pallas_call(
            _pe_add_3d_kernel,
            out_shape=jax.ShapeDtypeStruct((S, B, D), x.dtype),
            grid=grid,
            in_specs=[
                pl.BlockSpec(memory_space=pltpu.SMEM),                 # scale
                pl.BlockSpec((ts, B, D), lambda i: (i, 0, 0)),         # x tile
                pl.BlockSpec((ts, D), lambda i: (i, 0)),               # pe tile
            ],
            out_specs=pl.BlockSpec((ts, B, D), lambda i: (i, 0, 0)),
            compiler_params=cparams,
        )(scale, x, pe_arg)

    # Small B or D < 128: lane-dense 2D view (free row-major reshape, no copy).
    x2 = x.reshape(S, B * D)
    out2 = pl.pallas_call(
        functools.partial(_pe_add_2d_kernel, batch=B),
        out_shape=jax.ShapeDtypeStruct((S, B * D), x.dtype),
        grid=grid,
        in_specs=[
            pl.BlockSpec(memory_space=pltpu.SMEM),                     # scale
            pl.BlockSpec((ts, B * D), lambda i: (i, 0)),               # x tile
            pl.BlockSpec((ts, D), lambda i: (i, 0)),                   # pe tile
        ],
        out_specs=pl.BlockSpec((ts, B * D), lambda i: (i, 0)),
        compiler_params=cparams,
    )(scale, x2, pe_arg)
    return out2.reshape(S, B, D)


if __name__ == "__main__":
    # Small shapes consistent with the module: seq=8, batch=2, d_model=32
    S, B, D = 8, 2, 32
    key = jax.random.PRNGKey(0)
    x = jax.random.normal(key, (S, B, D), dtype=jnp.float32)

    # Deterministic parameter init matching the module's __init__:
    scale = jnp.ones((1,), dtype=jnp.float32)          # nn.Parameter(torch.ones(1))
    pe = make_pe_table(D, max_len=5000)                # registered buffer (stored 2D)

    out = positional_encoding_forward(x, pe, scale)
    out = jax.block_until_ready(out)

    # Reference check in plain JAX (eval-mode dropout = identity).
    ref = x + scale[0] * pe[:S][:, None, :]
    assert out.shape == (S, B, D)
    assert jnp.allclose(out, ref, atol=1e-6, rtol=1e-6)

    print("KERNEL_OK")
</pallas_src>

<mosaic_0001>
module attributes {stable_mosaic.version = 11 : i64} {
  func.func @_pe_add_2d_kernel(%arg0: i32, %arg1: memref<1xf32, #tpu.memory_space<smem>>, %arg2: memref<8x64xf32, #tpu.memory_space<vmem>>, %arg3: memref<8x32xf32, #tpu.memory_space<vmem>>, %arg4: memref<8x64xf32, #tpu.memory_space<vmem>>) attributes {dimension_semantics = [#tpu.dimension_semantics<parallel>], iteration_bounds = array<i64: 1>, scalar_prefetch = 0 : i64, scratch_operands = 0 : i64, tpu.core_type = #tpu.core_type<tc>, window_params = [{transform_indices = @transform_0, window_bounds = array<i64: 1>}, {transform_indices = @transform_1, window_bounds = array<i64: 8, 64>}, {transform_indices = @transform_2, window_bounds = array<i64: 8, 32>}, {transform_indices = @transform_3, window_bounds = array<i64: 8, 64>}]} {
    %c0 = arith.constant 0 : index
    %0 = memref.load %arg1[%c0] : memref<1xf32, #tpu.memory_space<smem>>
    %c0_0 = arith.constant 0 : index
    %c0_1 = arith.constant 0 : index
    %1 = vector.load %arg3[%c0_0, %c0_1] : memref<8x32xf32, #tpu.memory_space<vmem>>, vector<8x32xf32>
    %2 = tpu.concatenate %1, %1 in 1 : vector<8x32xf32>, vector<8x32xf32> -> vector<8x64xf32>
    %c0_2 = arith.constant 0 : index
    %c0_3 = arith.constant 0 : index
    %3 = vector.load %arg2[%c0_2, %c0_3] : memref<8x64xf32, #tpu.memory_space<vmem>>, vector<8x64xf32>
    %4 = vector.broadcast %0 : f32 to vector<8x64xf32>
    %5 = arith.mulf %4, %2 : vector<8x64xf32>
    %6 = arith.addf %3, %5 : vector<8x64xf32>
    %c0_4 = arith.constant 0 : index
    %c0_5 = arith.constant 0 : index
    %7 = vector.load %arg4[%c0_4, %c0_5] : memref<8x64xf32, #tpu.memory_space<vmem>>, vector<8x64xf32>
    tpu.vector_store %arg4[%c0_4, %c0_5], %6 {strides = array<i32>} : memref<8x64xf32, #tpu.memory_space<vmem>>, vector<8x64xf32>,
    return
  }
  func.func @transform_0(%arg0: i32) -> i32 {
    %c0_i32 = arith.constant 0 : i32
    %c0_i32_0 = arith.constant 0 : i32
    return %c0_i32 : i32
  }
  func.func @transform_1(%arg0: i32) -> (i32, i32) {
    %c0_i32 = arith.constant 0 : i32
    %c0_i32_0 = arith.constant 0 : i32
    return %arg0, %c0_i32 : i32, i32
  }
  func.func @transform_2(%arg0: i32) -> (i32, i32) {
    %c0_i32 = arith.constant 0 : i32
    %c0_i32_0 = arith.constant 0 : i32
    return %arg0, %c0_i32 : i32, i32
  }
  func.func @transform_3(%arg0: i32) -> (i32, i32) {
    %c0_i32 = arith.constant 0 : i32
    %c0_i32_0 = arith.constant 0 : i32
    return %arg0, %c0_i32 : i32, i32
  }
}

</mosaic_0001>

<llo_original>
// kernel: tpu_custom_call.1
$region0: #{tpu_custom_call.1}
  #allocation0 [shape = 'u32[]', space=smem, size = 0x4, offset = 0x4, fixed_abs, tag = 'smem constant byte address 0x4 - core index']
  #allocation1 [shape = 'u32[144,128]{1,0:T(1,128)}', space=vmem, size = 0x12000, scoped, tag = 'internal scratch']
  #allocation2 [shape = 'f32[1]{0:T(128)S(6)}', space=smem, size = 0x200, scoped, tag = 'scoped memory for tpu_custom_call.1']
  %s0 = inlined_call_operand.<no memory space> [shape: f32[1], index: 0, kind: input, shape index: {}]
  %s1 = inlined_call_operand.vmem [shape: f32[8,64], index: 1, kind: input, shape index: {}]
  %s2 = inlined_call_operand.vmem [shape: f32[5000,32], index: 2, kind: input, shape index: {}]
  %s3 = inlined_call_operand.hbm [shape: f32[8,64], index: 3, kind: output, shape index: {}]
  %s4 = sld [smem:[#allocation0]]
  $region22: #{tpu_custom_call.1} parent=0
    _
  %s6 = ssub.s32 1, %s4
  %s7 = scalar_select 0, %s6, %s4
  %8 = sst [smem:[#allocation2]] %s0
  $region1: #{tpu_custom_call.1} parent=0
    #allocation3 [shape = 'u8[4096]{0}', space=vmem, size = 0x1000, scoped, tag = 'output window, operand 0, single buffered']
    #allocation4 [shape = 's32[1]{0}', space=sflag, size = 0x4, scoped, tag = 'scoped memory for tpu_custom_call.1']
    %9 = vsyncpa [#allocation4], 0
    // Predicated region
    $region2: #{tpu_custom_call.1} parent=1 // pred_check
      _
    $region3: #{tpu_custom_call.1} parent=1 // pred_check_branch
      %11 = sbr.rel (0) target = $region5
    $region4: #{tpu_custom_call.1} parent=1 // pred_region
      _
    $region5: #{tpu_custom_call.1} parent=1 // pred_fallthru
      _
    // Predicated region
    $region6: #{tpu_custom_call.1} parent=1 // pred_check
      _
    $region7: #{tpu_custom_call.1} parent=1 // pred_check_branch
      %13 = sbr.rel (0) target = $region9
    $region8: #{tpu_custom_call.1} parent=1 // pred_region
      _
    $region9: #{tpu_custom_call.1} parent=1 // pred_fallthru
      _
    // Predicated region
    $region10: #{tpu_custom_call.1} parent=1 // pred_check
      _
    $region11: #{tpu_custom_call.1} parent=1 // pred_check_branch
      %15 = sbr.rel (0) target = $region13
    $region12: #{tpu_custom_call.1} parent=1 // pred_region
      _
    $region13: #{tpu_custom_call.1} parent=1 // pred_fallthru
      _
    %s16 = sld [smem:[#allocation2]]
    %v17 = vld [vmem:[%s2] sm:$0xff]
    %19 = vrot.lane.b32.xlu0 %v17, 32
    %v20 = vpop.permute.xlu0 %19
    %vm22 = vcmask 261120
    %v23 = vsel %vm22, %v17, %v20
    %v24 = vld [vmem:[%s1] sm:$0xff]
    %v25 = vstv %s16
    %v26 = vmul.f32 %v25, %v23
    %v27 = vadd.f32 %v24, %v26
    %vm28 = vcmask 523264
    %29 = vst.msk [vmem:[#allocation3] sm:$0xff] %vm28, %v27
    // Predicated region
    $region14: #{tpu_custom_call.1} parent=1 // pred_check
      _
    $region15: #{tpu_custom_call.1} parent=1 // pred_check_branch
      %31 = sbr.rel (0) target = $region17
    $region16: #{tpu_custom_call.1} parent=1 // pred_region
      %s33 = ssub.s32 128, 128
      %34 = vsyncadd [#allocation4], %s33
      %s36 = sshll.u32 [#allocation3], 4
      %s37 = int_to_ptr.vmem [resolvable:$true] %s36
      %39 = dma.vmem_to_hbm [thread:$0]  %s37, 128, %s3, [#allocation4]
    $region17: #{tpu_custom_call.1} parent=1 // pred_fallthru
      _
    // Predicated region
    $region18: #{tpu_custom_call.1} parent=1 // pred_check
      _
    $region19: #{tpu_custom_call.1} parent=1 // pred_check_branch
      %41 = sbr.rel (0) target = $region21
    $region20: #{tpu_custom_call.1} parent=1 // pred_region
      %42 = dma.done [#allocation4], 128
    $region21: #{tpu_custom_call.1} parent=1 // pred_fallthru
      _
    %43 = vsyncpa [#allocation4], 1

</llo_original>
